<compile_context>
chip_gen: v7x
topology: tpu7x:2x2x1
jax: 0.10.0
libtpu: 0.0.40
codegen_flags: <defaults>
</compile_context>

<pallas_src>
import numpy as np
import jax
import jax.numpy as jnp
from jax.experimental import pallas as pl
from jax.experimental.pallas import tpu as pltpu


LANE = 128            # TPU lane width (last dim of every tile)
SUBLANE = 8           # sublane granularity for f32
MAX_BLOCK_ROWS = 512  # rows per grid step: 512*128*4 = 256 KiB in, G*3 MiB out


def make_lorentzian_params(grid_min=-2.0, grid_max=2.0, num_grids=5,
                           gamma=1.0, extra=3):
    """Mirror LorentzianBasisFunction.__init__ (grid buffer + gamma)."""
    h = (grid_max - grid_min) / num_grids
    G = num_grids + 2 * extra + 1
    grid = np.linspace(grid_min - h * extra, grid_max + h * extra, G).astype(np.float32)
    return {"grid": grid, "gamma": float(gamma)}


def _round_up(v, m):
    return ((v + m - 1) // m) * m


def lorentzian_basis_forward(x, params):
    """x: (...,) float32 -> (..., G) float32 via a Pallas TPU kernel."""
    grid = np.asarray(params["grid"], np.float32)
    gamma = float(params["gamma"])
    G = int(grid.shape[0])

    inv_gamma = np.float32(1.0 / gamma)
    # gamma^2 / ((x - g)^2 + gamma^2) == 1 / (((x - g) / gamma)^2 + 1)
    scaled_grid = [float(np.float32(g) * inv_gamma) for g in grid]  # baked f32 consts
    scale_x = float(inv_gamma) != 1.0                               # trace-time guard

    orig_shape = x.shape
    xf = x.reshape(-1).astype(jnp.float32)
    N = int(xf.shape[0])

    # Lay the flattened input out as a lane-dense (R, 128) slab; tile rows.
    rows_needed = max(pl.cdiv(N, LANE), 1)
    tR = min(MAX_BLOCK_ROWS, _round_up(rows_needed, SUBLANE))
    R = _round_up(rows_needed, tR)                 # multiple of tR
    N_pad = R * LANE
    xp = jnp.pad(xf, (0, N_pad - N)).reshape(R, LANE)

    def kernel(x_ref, o_ref):
        # Static unroll over the (small) number of grid points. Re-reading
        # x_ref from VMEM per g keeps vreg pressure low at tR=512.
        for g in range(G):
            xv = x_ref[...]                        # (tR, 128) f32, VMEM read
            if scale_x:
                xv = xv * jnp.float32(inv_gamma)
            d = xv - jnp.float32(scaled_grid[g])
            o_ref[g] = (jnp.float32(1.0) / (d * d + jnp.float32(1.0))).astype(o_ref.dtype)

    out = pl.pallas_call(
        kernel,
        out_shape=jax.ShapeDtypeStruct((G, R, LANE), jnp.float32),
        grid=(R // tR,),
        in_specs=[pl.BlockSpec((tR, LANE), lambda i: (i, 0))],
        out_specs=pl.BlockSpec((G, tR, LANE), lambda i: (0, i, 0)),
        compiler_params=pltpu.CompilerParams(
            dimension_semantics=("parallel",)),
    )(xp)

    # (G, R, 128) -> (N, G) -> (..., G): layout plumbing outside the kernel.
    out = jnp.transpose(out, (1, 2, 0)).reshape(N_pad, G)
    if N_pad != N:
        out = out[:N]
    return out.reshape(*orig_shape, G)


def lorentzian_basis_reference(x, params):
    """Plain-JAX reference mirroring the PyTorch forward exactly."""
    grid = jnp.asarray(params["grid"])
    gamma = params["gamma"]
    return gamma ** 2 / ((x[..., None] - grid) ** 2 + gamma ** 2)


if __name__ == "__main__":
    key = jax.random.PRNGKey(0)
    x = jax.random.normal(key, (2, 4, 16, 16), jnp.float32) * 3.0

    params = make_lorentzian_params()          # defaults: num_grids=5, extra=3 -> G=12
    G = params["grid"].shape[0]

    out = lorentzian_basis_forward(x, params)
    out = jax.block_until_ready(out)

    ref = lorentzian_basis_reference(x, params)
    assert out.shape == (2, 4, 16, 16, G)
    np.testing.assert_allclose(np.asarray(out), np.asarray(ref),
                               rtol=1e-6, atol=1e-6)

    print("KERNEL_OK")
</pallas_src>

<mosaic_0001>
module attributes {stable_mosaic.version = 11 : i64} {
  func.func @kernel(%arg0: i32, %arg1: memref<16x128xf32, #tpu.memory_space<vmem>>, %arg2: memref<12x16x128xf32, #tpu.memory_space<vmem>>) attributes {dimension_semantics = [#tpu.dimension_semantics<parallel>], iteration_bounds = array<i64: 1>, scalar_prefetch = 0 : i64, scratch_operands = 0 : i64, tpu.core_type = #tpu.core_type<tc>, window_params = [{transform_indices = @transform_0, window_bounds = array<i64: 16, 128>}, {transform_indices = @transform_1, window_bounds = array<i64: 12, 16, 128>}]} {
    %c0 = arith.constant 0 : index
    %c0_0 = arith.constant 0 : index
    %0 = vector.load %arg1[%c0, %c0_0] : memref<16x128xf32, #tpu.memory_space<vmem>>, vector<16x128xf32>
    %cst = arith.constant -4.400000e+00 : f32
    %1 = vector.broadcast %cst : f32 to vector<16x128xf32>
    %2 = arith.subf %0, %1 : vector<16x128xf32>
    %3 = arith.mulf %2, %2 : vector<16x128xf32>
    %cst_1 = arith.constant 1.000000e+00 : f32
    %4 = vector.broadcast %cst_1 : f32 to vector<16x128xf32>
    %5 = arith.addf %3, %4 : vector<16x128xf32>
    %cst_2 = arith.constant 1.000000e+00 : f32
    %6 = vector.broadcast %cst_2 : f32 to vector<16x128xf32>
    %7 = arith.divf %6, %5 : vector<16x128xf32>
    %c0_3 = arith.constant 0 : index
    %c0_4 = arith.constant 0 : index
    %c0_5 = arith.constant 0 : index
    %8 = vector.load %arg2[%c0_3, %c0_4, %c0_5] : memref<12x16x128xf32, #tpu.memory_space<vmem>>, vector<1x16x128xf32>
    %9 = vector.shape_cast %8 : vector<1x16x128xf32> to vector<16x128xf32>
    %10 = vector.shape_cast %7 : vector<16x128xf32> to vector<1x16x128xf32>
    tpu.vector_store %arg2[%c0_3, %c0_4, %c0_5], %10 {strides = array<i32>} : memref<12x16x128xf32, #tpu.memory_space<vmem>>, vector<1x16x128xf32>,
    %c0_6 = arith.constant 0 : index
    %c0_7 = arith.constant 0 : index
    %11 = vector.load %arg1[%c0_6, %c0_7] : memref<16x128xf32, #tpu.memory_space<vmem>>, vector<16x128xf32>
    %cst_8 = arith.constant -3.600000e+00 : f32
    %12 = vector.broadcast %cst_8 : f32 to vector<16x128xf32>
    %13 = arith.subf %11, %12 : vector<16x128xf32>
    %14 = arith.mulf %13, %13 : vector<16x128xf32>
    %cst_9 = arith.constant 1.000000e+00 : f32
    %15 = vector.broadcast %cst_9 : f32 to vector<16x128xf32>
    %16 = arith.addf %14, %15 : vector<16x128xf32>
    %cst_10 = arith.constant 1.000000e+00 : f32
    %17 = vector.broadcast %cst_10 : f32 to vector<16x128xf32>
    %18 = arith.divf %17, %16 : vector<16x128xf32>
    %c1 = arith.constant 1 : index
    %c0_11 = arith.constant 0 : index
    %c0_12 = arith.constant 0 : index
    %19 = vector.load %arg2[%c1, %c0_11, %c0_12] : memref<12x16x128xf32, #tpu.memory_space<vmem>>, vector<1x16x128xf32>
    %20 = vector.shape_cast %19 : vector<1x16x128xf32> to vector<16x128xf32>
    %21 = vector.shape_cast %18 : vector<16x128xf32> to vector<1x16x128xf32>
    tpu.vector_store %arg2[%c1, %c0_11, %c0_12], %21 {strides = array<i32>} : memref<12x16x128xf32, #tpu.memory_space<vmem>>, vector<1x16x128xf32>,
    %c0_13 = arith.constant 0 : index
    %c0_14 = arith.constant 0 : index
    %22 = vector.load %arg1[%c0_13, %c0_14] : memref<16x128xf32, #tpu.memory_space<vmem>>, vector<16x128xf32>
    %cst_15 = arith.constant -2.800000e+00 : f32
    %23 = vector.broadcast %cst_15 : f32 to vector<16x128xf32>
    %24 = arith.subf %22, %23 : vector<16x128xf32>
    %25 = arith.mulf %24, %24 : vector<16x128xf32>
    %cst_16 = arith.constant 1.000000e+00 : f32
    %26 = vector.broadcast %cst_16 : f32 to vector<16x128xf32>
    %27 = arith.addf %25, %26 : vector<16x128xf32>
    %cst_17 = arith.constant 1.000000e+00 : f32
    %28 = vector.broadcast %cst_17 : f32 to vector<16x128xf32>
    %29 = arith.divf %28, %27 : vector<16x128xf32>
    %c2 = arith.constant 2 : index
    %c0_18 = arith.constant 0 : index
    %c0_19 = arith.constant 0 : index
    %30 = vector.load %arg2[%c2, %c0_18, %c0_19] : memref<12x16x128xf32, #tpu.memory_space<vmem>>, vector<1x16x128xf32>
    %31 = vector.shape_cast %30 : vector<1x16x128xf32> to vector<16x128xf32>
    %32 = vector.shape_cast %29 : vector<16x128xf32> to vector<1x16x128xf32>
    tpu.vector_store %arg2[%c2, %c0_18, %c0_19], %32 {strides = array<i32>} : memref<12x16x128xf32, #tpu.memory_space<vmem>>, vector<1x16x128xf32>,
    %c0_20 = arith.constant 0 : index
    %c0_21 = arith.constant 0 : index
    %33 = vector.load %arg1[%c0_20, %c0_21] : memref<16x128xf32, #tpu.memory_space<vmem>>, vector<16x128xf32>
    %cst_22 = arith.constant -2.000000e+00 : f32
    %34 = vector.broadcast %cst_22 : f32 to vector<16x128xf32>
    %35 = arith.subf %33, %34 : vector<16x128xf32>
    %36 = arith.mulf %35, %35 : vector<16x128xf32>
    %cst_23 = arith.constant 1.000000e+00 : f32
    %37 = vector.broadcast %cst_23 : f32 to vector<16x128xf32>
    %38 = arith.addf %36, %37 : vector<16x128xf32>
    %cst_24 = arith.constant 1.000000e+00 : f32
    %39 = vector.broadcast %cst_24 : f32 to vector<16x128xf32>
    %40 = arith.divf %39, %38 : vector<16x128xf32>
    %c3 = arith.constant 3 : index
    %c0_25 = arith.constant 0 : index
    %c0_26 = arith.constant 0 : index
    %41 = vector.load %arg2[%c3, %c0_25, %c0_26] : memref<12x16x128xf32, #tpu.memory_space<vmem>>, vector<1x16x128xf32>
    %42 = vector.shape_cast %41 : vector<1x16x128xf32> to vector<16x128xf32>
    %43 = vector.shape_cast %40 : vector<16x128xf32> to vector<1x16x128xf32>
    tpu.vector_store %arg2[%c3, %c0_25, %c0_26], %43 {strides = array<i32>} : memref<12x16x128xf32, #tpu.memory_space<vmem>>, vector<1x16x128xf32>,
    %c0_27 = arith.constant 0 : index
    %c0_28 = arith.constant 0 : index
    %44 = vector.load %arg1[%c0_27, %c0_28] : memref<16x128xf32, #tpu.memory_space<vmem>>, vector<16x128xf32>
    %cst_29 = arith.constant -1.200000e+00 : f32
    %45 = vector.broadcast %cst_29 : f32 to vector<16x128xf32>
    %46 = arith.subf %44, %45 : vector<16x128xf32>
    %47 = arith.mulf %46, %46 : vector<16x128xf32>
    %cst_30 = arith.constant 1.000000e+00 : f32
    %48 = vector.broadcast %cst_30 : f32 to vector<16x128xf32>
    %49 = arith.addf %47, %48 : vector<16x128xf32>
    %cst_31 = arith.constant 1.000000e+00 : f32
    %50 = vector.broadcast %cst_31 : f32 to vector<16x128xf32>
    %51 = arith.divf %50, %49 : vector<16x128xf32>
    %c4 = arith.constant 4 : index
    %c0_32 = arith.constant 0 : index
    %c0_33 = arith.constant 0 : index
    %52 = vector.load %arg2[%c4, %c0_32, %c0_33] : memref<12x16x128xf32, #tpu.memory_space<vmem>>, vector<1x16x128xf32>
    %53 = vector.shape_cast %52 : vector<1x16x128xf32> to vector<16x128xf32>
    %54 = vector.shape_cast %51 : vector<16x128xf32> to vector<1x16x128xf32>
    tpu.vector_store %arg2[%c4, %c0_32, %c0_33], %54 {strides = array<i32>} : memref<12x16x128xf32, #tpu.memory_space<vmem>>, vector<1x16x128xf32>,
    %c0_34 = arith.constant 0 : index
    %c0_35 = arith.constant 0 : index
    %55 = vector.load %arg1[%c0_34, %c0_35] : memref<16x128xf32, #tpu.memory_space<vmem>>, vector<16x128xf32>
    %cst_36 = arith.constant -4.000000e-01 : f32
    %56 = vector.broadcast %cst_36 : f32 to vector<16x128xf32>
    %57 = arith.subf %55, %56 : vector<16x128xf32>
    %58 = arith.mulf %57, %57 : vector<16x128xf32>
    %cst_37 = arith.constant 1.000000e+00 : f32
    %59 = vector.broadcast %cst_37 : f32 to vector<16x128xf32>
    %60 = arith.addf %58, %59 : vector<16x128xf32>
    %cst_38 = arith.constant 1.000000e+00 : f32
    %61 = vector.broadcast %cst_38 : f32 to vector<16x128xf32>
    %62 = arith.divf %61, %60 : vector<16x128xf32>
    %c5 = arith.constant 5 : index
    %c0_39 = arith.constant 0 : index
    %c0_40 = arith.constant 0 : index
    %63 = vector.load %arg2[%c5, %c0_39, %c0_40] : memref<12x16x128xf32, #tpu.memory_space<vmem>>, vector<1x16x128xf32>
    %64 = vector.shape_cast %63 : vector<1x16x128xf32> to vector<16x128xf32>
    %65 = vector.shape_cast %62 : vector<16x128xf32> to vector<1x16x128xf32>
    tpu.vector_store %arg2[%c5, %c0_39, %c0_40], %65 {strides = array<i32>} : memref<12x16x128xf32, #tpu.memory_space<vmem>>, vector<1x16x128xf32>,
    %c0_41 = arith.constant 0 : index
    %c0_42 = arith.constant 0 : index
    %66 = vector.load %arg1[%c0_41, %c0_42] : memref<16x128xf32, #tpu.memory_space<vmem>>, vector<16x128xf32>
    %cst_43 = arith.constant 4.000000e-01 : f32
    %67 = vector.broadcast %cst_43 : f32 to vector<16x128xf32>
    %68 = arith.subf %66, %67 : vector<16x128xf32>
    %69 = arith.mulf %68, %68 : vector<16x128xf32>
    %cst_44 = arith.constant 1.000000e+00 : f32
    %70 = vector.broadcast %cst_44 : f32 to vector<16x128xf32>
    %71 = arith.addf %69, %70 : vector<16x128xf32>
    %cst_45 = arith.constant 1.000000e+00 : f32
    %72 = vector.broadcast %cst_45 : f32 to vector<16x128xf32>
    %73 = arith.divf %72, %71 : vector<16x128xf32>
    %c6 = arith.constant 6 : index
    %c0_46 = arith.constant 0 : index
    %c0_47 = arith.constant 0 : index
    %74 = vector.load %arg2[%c6, %c0_46, %c0_47] : memref<12x16x128xf32, #tpu.memory_space<vmem>>, vector<1x16x128xf32>
    %75 = vector.shape_cast %74 : vector<1x16x128xf32> to vector<16x128xf32>
    %76 = vector.shape_cast %73 : vector<16x128xf32> to vector<1x16x128xf32>
    tpu.vector_store %arg2[%c6, %c0_46, %c0_47], %76 {strides = array<i32>} : memref<12x16x128xf32, #tpu.memory_space<vmem>>, vector<1x16x128xf32>,
    %c0_48 = arith.constant 0 : index
    %c0_49 = arith.constant 0 : index
    %77 = vector.load %arg1[%c0_48, %c0_49] : memref<16x128xf32, #tpu.memory_space<vmem>>, vector<16x128xf32>
    %cst_50 = arith.constant 1.200000e+00 : f32
    %78 = vector.broadcast %cst_50 : f32 to vector<16x128xf32>
    %79 = arith.subf %77, %78 : vector<16x128xf32>
    %80 = arith.mulf %79, %79 : vector<16x128xf32>
    %cst_51 = arith.constant 1.000000e+00 : f32
    %81 = vector.broadcast %cst_51 : f32 to vector<16x128xf32>
    %82 = arith.addf %80, %81 : vector<16x128xf32>
    %cst_52 = arith.constant 1.000000e+00 : f32
    %83 = vector.broadcast %cst_52 : f32 to vector<16x128xf32>
    %84 = arith.divf %83, %82 : vector<16x128xf32>
    %c7 = arith.constant 7 : index
    %c0_53 = arith.constant 0 : index
    %c0_54 = arith.constant 0 : index
    %85 = vector.load %arg2[%c7, %c0_53, %c0_54] : memref<12x16x128xf32, #tpu.memory_space<vmem>>, vector<1x16x128xf32>
    %86 = vector.shape_cast %85 : vector<1x16x128xf32> to vector<16x128xf32>
    %87 = vector.shape_cast %84 : vector<16x128xf32> to vector<1x16x128xf32>
    tpu.vector_store %arg2[%c7, %c0_53, %c0_54], %87 {strides = array<i32>} : memref<12x16x128xf32, #tpu.memory_space<vmem>>, vector<1x16x128xf32>,
    %c0_55 = arith.constant 0 : index
    %c0_56 = arith.constant 0 : index
    %88 = vector.load %arg1[%c0_55, %c0_56] : memref<16x128xf32, #tpu.memory_space<vmem>>, vector<16x128xf32>
    %cst_57 = arith.constant 2.000000e+00 : f32
    %89 = vector.broadcast %cst_57 : f32 to vector<16x128xf32>
    %90 = arith.subf %88, %89 : vector<16x128xf32>
    %91 = arith.mulf %90, %90 : vector<16x128xf32>
    %cst_58 = arith.constant 1.000000e+00 : f32
    %92 = vector.broadcast %cst_58 : f32 to vector<16x128xf32>
    %93 = arith.addf %91, %92 : vector<16x128xf32>
    %cst_59 = arith.constant 1.000000e+00 : f32
    %94 = vector.broadcast %cst_59 : f32 to vector<16x128xf32>
    %95 = arith.divf %94, %93 : vector<16x128xf32>
    %c8 = arith.constant 8 : index
    %c0_60 = arith.constant 0 : index
    %c0_61 = arith.constant 0 : index
    %96 = vector.load %arg2[%c8, %c0_60, %c0_61] : memref<12x16x128xf32, #tpu.memory_space<vmem>>, vector<1x16x128xf32>
    %97 = vector.shape_cast %96 : vector<1x16x128xf32> to vector<16x128xf32>
    %98 = vector.shape_cast %95 : vector<16x128xf32> to vector<1x16x128xf32>
    tpu.vector_store %arg2[%c8, %c0_60, %c0_61], %98 {strides = array<i32>} : memref<12x16x128xf32, #tpu.memory_space<vmem>>, vector<1x16x128xf32>,
    %c0_62 = arith.constant 0 : index
    %c0_63 = arith.constant 0 : index
    %99 = vector.load %arg1[%c0_62, %c0_63] : memref<16x128xf32, #tpu.memory_space<vmem>>, vector<16x128xf32>
    %cst_64 = arith.constant 2.800000e+00 : f32
    %100 = vector.broadcast %cst_64 : f32 to vector<16x128xf32>
    %101 = arith.subf %99, %100 : vector<16x128xf32>
    %102 = arith.mulf %101, %101 : vector<16x128xf32>
    %cst_65 = arith.constant 1.000000e+00 : f32
    %103 = vector.broadcast %cst_65 : f32 to vector<16x128xf32>
    %104 = arith.addf %102, %103 : vector<16x128xf32>
    %cst_66 = arith.constant 1.000000e+00 : f32
    %105 = vector.broadcast %cst_66 : f32 to vector<16x128xf32>
    %106 = arith.divf %105, %104 : vector<16x128xf32>
    %c9 = arith.constant 9 : index
    %c0_67 = arith.constant 0 : index
    %c0_68 = arith.constant 0 : index
    %107 = vector.load %arg2[%c9, %c0_67, %c0_68] : memref<12x16x128xf32, #tpu.memory_space<vmem>>, vector<1x16x128xf32>
    %108 = vector.shape_cast %107 : vector<1x16x128xf32> to vector<16x128xf32>
    %109 = vector.shape_cast %106 : vector<16x128xf32> to vector<1x16x128xf32>
    tpu.vector_store %arg2[%c9, %c0_67, %c0_68], %109 {strides = array<i32>} : memref<12x16x128xf32, #tpu.memory_space<vmem>>, vector<1x16x128xf32>,
    %c0_69 = arith.constant 0 : index
    %c0_70 = arith.constant 0 : index
    %110 = vector.load %arg1[%c0_69, %c0_70] : memref<16x128xf32, #tpu.memory_space<vmem>>, vector<16x128xf32>
    %cst_71 = arith.constant 3.600000e+00 : f32
    %111 = vector.broadcast %cst_71 : f32 to vector<16x128xf32>
    %112 = arith.subf %110, %111 : vector<16x128xf32>
    %113 = arith.mulf %112, %112 : vector<16x128xf32>
    %cst_72 = arith.constant 1.000000e+00 : f32
    %114 = vector.broadcast %cst_72 : f32 to vector<16x128xf32>
    %115 = arith.addf %113, %114 : vector<16x128xf32>
    %cst_73 = arith.constant 1.000000e+00 : f32
    %116 = vector.broadcast %cst_73 : f32 to vector<16x128xf32>
    %117 = arith.divf %116, %115 : vector<16x128xf32>
    %c10 = arith.constant 10 : index
    %c0_74 = arith.constant 0 : index
    %c0_75 = arith.constant 0 : index
    %118 = vector.load %arg2[%c10, %c0_74, %c0_75] : memref<12x16x128xf32, #tpu.memory_space<vmem>>, vector<1x16x128xf32>
    %119 = vector.shape_cast %118 : vector<1x16x128xf32> to vector<16x128xf32>
    %120 = vector.shape_cast %117 : vector<16x128xf32> to vector<1x16x128xf32>
    tpu.vector_store %arg2[%c10, %c0_74, %c0_75], %120 {strides = array<i32>} : memref<12x16x128xf32, #tpu.memory_space<vmem>>, vector<1x16x128xf32>,
    %c0_76 = arith.constant 0 : index
    %c0_77 = arith.constant 0 : index
    %121 = vector.load %arg1[%c0_76, %c0_77] : memref<16x128xf32, #tpu.memory_space<vmem>>, vector<16x128xf32>
    %cst_78 = arith.constant 4.400000e+00 : f32
    %122 = vector.broadcast %cst_78 : f32 to vector<16x128xf32>
    %123 = arith.subf %121, %122 : vector<16x128xf32>
    %124 = arith.mulf %123, %123 : vector<16x128xf32>
    %cst_79 = arith.constant 1.000000e+00 : f32
    %125 = vector.broadcast %cst_79 : f32 to vector<16x128xf32>
    %126 = arith.addf %124, %125 : vector<16x128xf32>
    %cst_80 = arith.constant 1.000000e+00 : f32
    %127 = vector.broadcast %cst_80 : f32 to vector<16x128xf32>
    %128 = arith.divf %127, %126 : vector<16x128xf32>
    %c11 = arith.constant 11 : index
    %c0_81 = arith.constant 0 : index
    %c0_82 = arith.constant 0 : index
    %129 = vector.load %arg2[%c11, %c0_81, %c0_82] : memref<12x16x128xf32, #tpu.memory_space<vmem>>, vector<1x16x128xf32>
    %130 = vector.shape_cast %129 : vector<1x16x128xf32> to vector<16x128xf32>
    %131 = vector.shape_cast %128 : vector<16x128xf32> to vector<1x16x128xf32>
    tpu.vector_store %arg2[%c11, %c0_81, %c0_82], %131 {strides = array<i32>} : memref<12x16x128xf32, #tpu.memory_space<vmem>>, vector<1x16x128xf32>,
    return
  }
  func.func @transform_0(%arg0: i32) -> (i32, i32) {
    %c0_i32 = arith.constant 0 : i32
    %c0_i32_0 = arith.constant 0 : i32
    return %arg0, %c0_i32 : i32, i32
  }
  func.func @transform_1(%arg0: i32) -> (i32, i32, i32) {
    %c0_i32 = arith.constant 0 : i32
    %c0_i32_0 = arith.constant 0 : i32
    %c0_i32_1 = arith.constant 0 : i32
    return %c0_i32, %arg0, %c0_i32_0 : i32, i32, i32
  }
}

</mosaic_0001>

<llo_original>
// kernel: tpu_custom_call.1
$region0: #{tpu_custom_call.1}
  #allocation0 [shape = 'u32[]', space=smem, size = 0x4, offset = 0x4, fixed_abs, tag = 'smem constant byte address 0x4 - core index']
  #allocation1 [shape = 'u32[144,128]{1,0:T(1,128)}', space=vmem, size = 0x12000, scoped, tag = 'internal scratch']
  %s0 = inlined_call_operand.hbm [shape: f32[16,128], index: 0, kind: input, shape index: {}]
  %s1 = inlined_call_operand.hbm [shape: f32[12,16,128], index: 1, kind: output, shape index: {}]
  %s2 = sld [smem:[#allocation0]]
  $region18: #{tpu_custom_call.1} parent=0
    _
  %s4 = ssub.s32 1, %s2
  %s5 = scalar_select 0, %s4, %s2
  $region1: #{tpu_custom_call.1} parent=0
    #allocation2 [shape = 'u8[8192]{0}', space=vmem, size = 0x2000, scoped, tag = 'input window, operand 0, single buffered']
    #allocation3 [shape = 's32[1]{0}', space=sflag, size = 0x4, scoped, tag = 'scoped memory for tpu_custom_call.1']
    #allocation4 [shape = 's32[1]{0}', space=sflag, size = 0x4, scoped, tag = 'scoped memory for tpu_custom_call.1']
    #allocation5 [shape = 'u8[98304]{0}', space=vmem, size = 0x18000, scoped, tag = 'output window, operand 0, single buffered']
    %6 = vsyncpa [#allocation3], 0
    %7 = vsyncpa [#allocation4], 0
    // Predicated region
    $region2: #{tpu_custom_call.1} parent=1 // pred_check
      _
    $region3: #{tpu_custom_call.1} parent=1 // pred_check_branch
      %9 = sbr.rel (0) target = $region5
    $region4: #{tpu_custom_call.1} parent=1 // pred_region
      %s11 = ssub.s32 256, 256
      %12 = vsyncadd [#allocation3], %s11
      %s13 = sshll.u32 [#allocation2], 4
      %s14 = int_to_ptr.vmem [resolvable:$true] %s13
      %19 = dma.hbm_to_vmem [thread:$0]  %s0, 256, %s14, [#allocation3], 128, 128, 8
    $region5: #{tpu_custom_call.1} parent=1 // pred_fallthru
      _
    // Predicated region
    $region6: #{tpu_custom_call.1} parent=1 // pred_check
      _
    $region7: #{tpu_custom_call.1} parent=1 // pred_check_branch
      %21 = sbr.rel (0) target = $region9
    $region8: #{tpu_custom_call.1} parent=1 // pred_region
      %22 = dma.done [#allocation3], 256
    $region9: #{tpu_custom_call.1} parent=1 // pred_fallthru
      _
    %v23 = vld [vmem:[#allocation2] sm:$0xff]
    %v24 = vld [vmem:[#allocation2 + $0x8] sm:$0xff]
    %v25 = vsub.f32 %v23, -4.4
    %v26 = vsub.f32 %v24, -4.4
    %v27 = vmul.f32 %v25, %v25
    %v28 = vmul.f32 %v26, %v26
    %v29 = vadd.f32 %v27, 1.0
    %v30 = vadd.f32 %v28, 1.0
    %v31 = vrcp.pop %v29
    %v32 = vmul.f32 1.0, %v31
    %v33 = vrcp.pop %v30
    %v34 = vmul.f32 1.0, %v33
    %35 = vst [vmem:[#allocation5] sm:$0xff] %v32
    %36 = vst [vmem:[#allocation5 + $0x8] sm:$0xff] %v34
    %v37 = vld [vmem:[#allocation2] sm:$0xff]
    %v38 = vld [vmem:[#allocation2 + $0x8] sm:$0xff]
    %v39 = vsub.f32 %v37, -3.6
    %v40 = vsub.f32 %v38, -3.6
    %v41 = vmul.f32 %v39, %v39
    %v42 = vmul.f32 %v40, %v40
    %v43 = vadd.f32 %v41, 1.0
    %v44 = vadd.f32 %v42, 1.0
    %v45 = vrcp.pop %v43
    %v46 = vmul.f32 1.0, %v45
    %v47 = vrcp.pop %v44
    %v48 = vmul.f32 1.0, %v47
    %s49 = scalar_lea.vmem [#allocation5], 16
    %50 = vst [vmem:[%s49] sm:$0xff] %v46
    %51 = vst [vmem:[%s49 + $0x8] sm:$0xff] %v48
    %v52 = vld [vmem:[#allocation2] sm:$0xff]
    %v53 = vld [vmem:[#allocation2 + $0x8] sm:$0xff]
    %v54 = vsub.f32 %v52, -2.8
    %v55 = vsub.f32 %v53, -2.8
    %v56 = vmul.f32 %v54, %v54
    %v57 = vmul.f32 %v55, %v55
    %v58 = vadd.f32 %v56, 1.0
    %v59 = vadd.f32 %v57, 1.0
    %v60 = vrcp.pop %v58
    %v61 = vmul.f32 1.0, %v60
    %v62 = vrcp.pop %v59
    %v63 = vmul.f32 1.0, %v62
    %s64 = scalar_lea.vmem [#allocation5], 32
    %65 = vst [vmem:[%s64] sm:$0xff] %v61
    %66 = vst [vmem:[%s64 + $0x8] sm:$0xff] %v63
    %v67 = vld [vmem:[#allocation2] sm:$0xff]
    %v68 = vld [vmem:[#allocation2 + $0x8] sm:$0xff]
    %v69 = vsub.f32 %v67, -2.0
    %v70 = vsub.f32 %v68, -2.0
    %v71 = vmul.f32 %v69, %v69
    %v72 = vmul.f32 %v70, %v70
    %v73 = vadd.f32 %v71, 1.0
    %v74 = vadd.f32 %v72, 1.0
    %v75 = vrcp.pop %v73
    %v76 = vmul.f32 1.0, %v75
    %v77 = vrcp.pop %v74
    %v78 = vmul.f32 1.0, %v77
    %s79 = scalar_lea.vmem [#allocation5], 48
    %80 = vst [vmem:[%s79] sm:$0xff] %v76
    %81 = vst [vmem:[%s79 + $0x8] sm:$0xff] %v78
    %v82 = vld [vmem:[#allocation2] sm:$0xff]
    %v83 = vld [vmem:[#allocation2 + $0x8] sm:$0xff]
    %v84 = vsub.f32 %v82, -1.2
    %v85 = vsub.f32 %v83, -1.2
    %v86 = vmul.f32 %v84, %v84
    %v87 = vmul.f32 %v85, %v85
    %v88 = vadd.f32 %v86, 1.0
    %v89 = vadd.f32 %v87, 1.0
    %v90 = vrcp.pop %v88
    %v91 = vmul.f32 1.0, %v90
    %v92 = vrcp.pop %v89
    %v93 = vmul.f32 1.0, %v92
    %s94 = scalar_lea.vmem [#allocation5], 64
    %95 = vst [vmem:[%s94] sm:$0xff] %v91
    %96 = vst [vmem:[%s94 + $0x8] sm:$0xff] %v93
    %v97 = vld [vmem:[#allocation2] sm:$0xff]
    %v98 = vld [vmem:[#allocation2 + $0x8] sm:$0xff]
    %v99 = vsub.f32 %v97, -0.4
    %v100 = vsub.f32 %v98, -0.4
    %v101 = vmul.f32 %v99, %v99
    %v102 = vmul.f32 %v100, %v100
    %v103 = vadd.f32 %v101, 1.0
    %v104 = vadd.f32 %v102, 1.0
    %v105 = vrcp.pop %v103
    %v106 = vmul.f32 1.0, %v105
    %v107 = vrcp.pop %v104
    %v108 = vmul.f32 1.0, %v107
    %s109 = scalar_lea.vmem [#allocation5], 80
    %110 = vst [vmem:[%s109] sm:$0xff] %v106
    %111 = vst [vmem:[%s109 + $0x8] sm:$0xff] %v108
    %v112 = vld [vmem:[#allocation2] sm:$0xff]
    %v113 = vld [vmem:[#allocation2 + $0x8] sm:$0xff]
    %v114 = vsub.f32 %v112, 0.4
    %v115 = vsub.f32 %v113, 0.4
    %v116 = vmul.f32 %v114, %v114
    %v117 = vmul.f32 %v115, %v115
    %v118 = vadd.f32 %v116, 1.0
    %v119 = vadd.f32 %v117, 1.0
    %v120 = vrcp.pop %v118
    %v121 = vmul.f32 1.0, %v120
    %v122 = vrcp.pop %v119
    %v123 = vmul.f32 1.0, %v122
    %s124 = scalar_lea.vmem [#allocation5], 96
    %125 = vst [vmem:[%s124] sm:$0xff] %v121
    %126 = vst [vmem:[%s124 + $0x8] sm:$0xff] %v123
    %v127 = vld [vmem:[#allocation2] sm:$0xff]
    %v128 = vld [vmem:[#allocation2 + $0x8] sm:$0xff]
    %v129 = vsub.f32 %v127, 1.2
    %v130 = vsub.f32 %v128, 1.2
    %v131 = vmul.f32 %v129, %v129
    %v132 = vmul.f32 %v130, %v130
    %v133 = vadd.f32 %v131, 1.0
    %v134 = vadd.f32 %v132, 1.0
    %v135 = vrcp.pop %v133
    %v136 = vmul.f32 1.0, %v135
    %v137 = vrcp.pop %v134
    %v138 = vmul.f32 1.0, %v137
    %s139 = scalar_lea.vmem [#allocation5], 112
    %140 = vst [vmem:[%s139] sm:$0xff] %v136
    %141 = vst [vmem:[%s139 + $0x8] sm:$0xff] %v138
    %v142 = vld [vmem:[#allocation2] sm:$0xff]
    %v143 = vld [vmem:[#allocation2 + $0x8] sm:$0xff]
    %v144 = vsub.f32 %v142, 2.0
    %v145 = vsub.f32 %v143, 2.0
    %v146 = vmul.f32 %v144, %v144
    %v147 = vmul.f32 %v145, %v145
    %v148 = vadd.f32 %v146, 1.0
    %v149 = vadd.f32 %v147, 1.0
    %v150 = vrcp.pop %v148
    %v151 = vmul.f32 1.0, %v150
    %v152 = vrcp.pop %v149
    %v153 = vmul.f32 1.0, %v152
    %s154 = scalar_lea.vmem [#allocation5], 128
    %155 = vst [vmem:[%s154] sm:$0xff] %v151
    %156 = vst [vmem:[%s154 + $0x8] sm:$0xff] %v153
    %v157 = vld [vmem:[#allocation2] sm:$0xff]
    %v158 = vld [vmem:[#allocation2 + $0x8] sm:$0xff]
    %v159 = vsub.f32 %v157, 2.8
    %v160 = vsub.f32 %v158, 2.8
    %v161 = vmul.f32 %v159, %v159
    %v162 = vmul.f32 %v160, %v160
    %v163 = vadd.f32 %v161, 1.0
    %v164 = vadd.f32 %v162, 1.0
    %v165 = vrcp.pop %v163
    %v166 = vmul.f32 1.0, %v165
    %v167 = vrcp.pop %v164
    %v168 = vmul.f32 1.0, %v167
    %s169 = scalar_lea.vmem [#allocation5], 144
    %170 = vst [vmem:[%s169] sm:$0xff] %v166
    %171 = vst [vmem:[%s169 + $0x8] sm:$0xff] %v168
    %v172 = vld [vmem:[#allocation2] sm:$0xff]
    %v173 = vld [vmem:[#allocation2 + $0x8] sm:$0xff]
    %v174 = vsub.f32 %v172, 3.6
    %v175 = vsub.f32 %v173, 3.6
    %v176 = vmul.f32 %v174, %v174
    %v177 = vmul.f32 %v175, %v175
    %v178 = vadd.f32 %v176, 1.0
    %v179 = vadd.f32 %v177, 1.0
    %v180 = vrcp.pop %v178
    %v181 = vmul.f32 1.0, %v180
    %v182 = vrcp.pop %v179
    %v183 = vmul.f32 1.0, %v182
    %s184 = scalar_lea.vmem [#allocation5], 160
    %185 = vst [vmem:[%s184] sm:$0xff] %v181
    %186 = vst [vmem:[%s184 + $0x8] sm:$0xff] %v183
    %v187 = vld [vmem:[#allocation2] sm:$0xff]
    %v188 = vld [vmem:[#allocation2 + $0x8] sm:$0xff]
    %v189 = vsub.f32 %v187, 4.4
    %v190 = vsub.f32 %v188, 4.4
    %v191 = vmul.f32 %v189, %v189
    %v192 = vmul.f32 %v190, %v190
    %v193 = vadd.f32 %v191, 1.0
    %v194 = vadd.f32 %v192, 1.0
    %v195 = vrcp.pop %v193
    %v196 = vmul.f32 1.0, %v195
    %v197 = vrcp.pop %v194
    %v198 = vmul.f32 1.0, %v197
    %s199 = scalar_lea.vmem [#allocation5], 176
    %200 = vst [vmem:[%s199] sm:$0xff] %v196
    %201 = vst [vmem:[%s199 + $0x8] sm:$0xff] %v198
    // Predicated region
    $region10: #{tpu_custom_call.1} parent=1 // pred_check
      _
    $region11: #{tpu_custom_call.1} parent=1 // pred_check_branch
      %203 = sbr.rel (0) target = $region13
    $region12: #{tpu_custom_call.1} parent=1 // pred_region
      %s205 = ssub.s32 3072, 3072
      %206 = vsyncadd [#allocation4], %s205
      %s207 = sshll.u32 [#allocation5], 4
      %s208 = int_to_ptr.vmem [resolvable:$true] %s207
      %213 = dma.vmem_to_hbm [thread:$0]  %s208, 3072, %s1, [#allocation4], 128, 128, 8
    $region13: #{tpu_custom_call.1} parent=1 // pred_fallthru
      _
    // Predicated region
    $region14: #{tpu_custom_call.1} parent=1 // pred_check
      _
    $region15: #{tpu_custom_call.1} parent=1 // pred_check_branch
      %215 = sbr.rel (0) target = $region17
    $region16: #{tpu_custom_call.1} parent=1 // pred_region
      %216 = dma.done [#allocation4], 3072
    $region17: #{tpu_custom_call.1} parent=1 // pred_fallthru
      _
    %217 = vsyncpa [#allocation3], 1
    %218 = vsyncpa [#allocation4], 1

</llo_original>
